<compile_context>
chip_gen: v7x
topology: tpu7x:2x2x1
jax: 0.10.0
libtpu: 0.0.40
codegen_flags: <defaults>
</compile_context>

<pallas_src>
import functools

import jax
import jax.numpy as jnp
from jax import lax
from jax.experimental import pallas as pl
from jax.experimental.pallas import tpu as pltpu


def _diag_normal_kernel(x_ref, w1t_ref, b1t_ref, w2t_ref, b2t_ref,
                        w3t_ref, b3t_ref, mean_ref, scale_ref, *, out_dim):
    """Fused MLP forward for one batch tile, batch on the lane axis.

    x tile is f32 [TB, in_dim] (cast to bf16 in-kernel); weights are pre-
    transposed bf16; activations are [hidden, TB]; accumulation and all
    elementwise math (bias, tanh, exp) stay f32.
    """
    xb = x_ref[...].astype(jnp.bfloat16)                       # [TB, in_dim] bf16

    # Layer 1: h1t[h, b] = sum_k W1t[h, k] * x[b, k]  (A @ B^T on the MXU).
    h1t = jnp.tanh(
        lax.dot_general(w1t_ref[...], xb, (((1,), (1,)), ((), ())),
                        preferred_element_type=jnp.float32)
        + b1t_ref[...]
    )                                                           # [hidden, TB] f32

    # Layer 2: plain matmul, batch stays on lanes.
    h2t = jnp.tanh(
        jnp.dot(w2t_ref[...], h1t.astype(jnp.bfloat16),
                preferred_element_type=jnp.float32)
        + b2t_ref[...]
    )                                                           # [hidden, TB] f32

    # Layer 3 (fused mean/sd): one dot -> [2*out_dim, TB]; split on sublanes
    # (out_dim == 8 is exactly one f32 sublane tile, so the slice is free).
    pt = (jnp.dot(w3t_ref[...], h2t.astype(jnp.bfloat16),
                  preferred_element_type=jnp.float32)
          + b3t_ref[...])                                       # [2*out_dim, TB]

    mean_ref[...] = pt[:out_dim, :]
    scale_ref[...] = jnp.exp(pt[out_dim:, :])


@functools.partial(jax.jit, static_argnames=("out_dim", "block_batch"))
def diag_normal_network(x, w1, b1, w2, b2, w3, b3, *, out_dim, block_batch=None):
    batch, in_dim = x.shape
    hidden_dim = w1.shape[1]

    # ---- batch tile selection -------------------------------------------------
    if block_batch is not None:
        tb = min(block_batch, batch)
    else:
        # Auto: biggest tile that still gives 2 grid steps (feeds both v7x TCs);
        # a single extra ~0.35 us step is noise on 1-TC v5e/v6e.
        tb = batch // 2 if (batch % 256 == 0) else batch
    assert batch % tb == 0, "demo wrapper assumes batch divisible by the batch tile"
    assert tb % 128 == 0 or tb == batch, "batch tile must be lane-aligned (x128)"
    grid = (batch // tb,)

    # ---- weight prep (tiny, done once; VMEM-resident across grid steps) -------
    w1t = w1.T.astype(jnp.bfloat16)          # [hidden, in_dim]
    w2t = w2.T.astype(jnp.bfloat16)          # [hidden, hidden]
    w3t = w3.T.astype(jnp.bfloat16)          # [2*out_dim, hidden]
    b1t = b1.T                                # [hidden, 1] f32
    b2t = b2.T                                # [hidden, 1] f32
    b3t = b3.T                                # [2*out_dim, 1] f32

    # x tiled along batch (f32, cast in-kernel); outputs tiled along lanes.
    x_spec = pl.BlockSpec((tb, in_dim), lambda i: (i, 0))
    const = lambda a: pl.BlockSpec(a.shape, lambda i: (0, 0))
    out_spec = pl.BlockSpec((out_dim, tb), lambda i: (0, i))

    out_shape = (
        jax.ShapeDtypeStruct((out_dim, batch), jnp.float32),   # mean^T
        jax.ShapeDtypeStruct((out_dim, batch), jnp.float32),   # scale^T = exp(sd)^T
    )

    mean_t, scale_t = pl.pallas_call(
        functools.partial(_diag_normal_kernel, out_dim=out_dim),
        out_shape=out_shape,
        grid=grid,
        in_specs=[
            x_spec,
            const(w1t), const(b1t),
            const(w2t), const(b2t),
            const(w3t), const(b3t),
        ],
        out_specs=(out_spec, out_spec),
        compiler_params=pltpu.CompilerParams(
            dimension_semantics=("parallel",),
        ),
    )(x, w1t, b1t, w2t, b2t, w3t, b3t)

    # Restore the module's [batch, out_dim] layout (tiny [out_dim, batch] arrays).
    return mean_t.T, scale_t.T


def init_params(key, in_dim, out_dim, hidden_dim):
    """Deterministic init mimicking nn.Linear's default U(-1/sqrt(fan_in), ...)."""
    def linear(k, fan_in, fan_out):
        kw, kb = jax.random.split(k)
        bound = 1.0 / jnp.sqrt(fan_in)
        w = jax.random.uniform(kw, (fan_in, fan_out), jnp.float32, -bound, bound)
        b = jax.random.uniform(kb, (1, fan_out), jnp.float32, -bound, bound)
        return w, b

    k1, k2, k3 = jax.random.split(key, 3)
    w1, b1 = linear(k1, in_dim, hidden_dim)
    w2, b2 = linear(k2, hidden_dim, hidden_dim)
    w3, b3 = linear(k3, hidden_dim, 2 * out_dim)
    return w1, b1, w2, b2, w3, b3


if __name__ == "__main__":
    in_dim, out_dim, hidden_dim = 16, 8, 32
    batch = 256            # auto-tile -> TB=128, grid=(2,): both v7x TCs get work

    key = jax.random.PRNGKey(0)
    kx, kp = jax.random.split(key)
    x = jax.random.normal(kx, (batch, in_dim), dtype=jnp.float32)
    w1, b1, w2, b2, w3, b3 = init_params(kp, in_dim, out_dim, hidden_dim)

    mean, scale = diag_normal_network(x, w1, b1, w2, b2, w3, b3, out_dim=out_dim)
    jax.block_until_ready((mean, scale))

    # Pure-JAX reference of the same mixed-precision forward pass
    # (bf16-rounded matmul inputs, f32 accumulation / elementwise).
    r = lambda a: a.astype(jnp.bfloat16).astype(jnp.float32)
    h1 = jnp.tanh(r(x) @ r(w1) + b1)
    h2 = jnp.tanh(r(h1) @ r(w2) + b2)
    p = r(h2) @ r(w3) + b3
    ref_mean, ref_scale = p[:, :out_dim], jnp.exp(p[:, out_dim:])

    assert mean.shape == (batch, out_dim) and scale.shape == (batch, out_dim)
    assert bool(jnp.all(jnp.isfinite(mean))) and bool(jnp.all(jnp.isfinite(scale)))
    assert jnp.allclose(mean, ref_mean, atol=2e-3, rtol=2e-3), \
        float(jnp.max(jnp.abs(mean - ref_mean)))
    assert jnp.allclose(scale, ref_scale, atol=2e-3, rtol=2e-3), \
        float(jnp.max(jnp.abs(scale - ref_scale)))

    # TODO(synk): scale = exp(sd) is unclamped, matching torch semantics (may inf).
    print("KERNEL_OK")
</pallas_src>

<mosaic_0001>
module attributes {stable_mosaic.version = 11 : i64} {
  func.func @_diag_normal_kernel(%arg0: i32, %arg1: memref<128x16xf32, #tpu.memory_space<vmem>>, %arg2: memref<32x16xbf16, #tpu.memory_space<vmem>>, %arg3: memref<32x1xf32, #tpu.memory_space<vmem>>, %arg4: memref<32x32xbf16, #tpu.memory_space<vmem>>, %arg5: memref<32x1xf32, #tpu.memory_space<vmem>>, %arg6: memref<16x32xbf16, #tpu.memory_space<vmem>>, %arg7: memref<16x1xf32, #tpu.memory_space<vmem>>, %arg8: memref<8x128xf32, #tpu.memory_space<vmem>>, %arg9: memref<8x128xf32, #tpu.memory_space<vmem>>) attributes {dimension_semantics = [#tpu.dimension_semantics<parallel>], iteration_bounds = array<i64: 2>, scalar_prefetch = 0 : i64, scratch_operands = 0 : i64, tpu.core_type = #tpu.core_type<tc>, window_params = [{transform_indices = @transform_0, window_bounds = array<i64: 128, 16>}, {pipeline_mode = #tpu.pipeline_mode<synchronous>, transform_indices = @transform_1, window_bounds = array<i64: 32, 16>}, {pipeline_mode = #tpu.pipeline_mode<synchronous>, transform_indices = @transform_2, window_bounds = array<i64: 32, 1>}, {pipeline_mode = #tpu.pipeline_mode<synchronous>, transform_indices = @transform_3, window_bounds = array<i64: 32, 32>}, {pipeline_mode = #tpu.pipeline_mode<synchronous>, transform_indices = @transform_4, window_bounds = array<i64: 32, 1>}, {pipeline_mode = #tpu.pipeline_mode<synchronous>, transform_indices = @transform_5, window_bounds = array<i64: 16, 32>}, {pipeline_mode = #tpu.pipeline_mode<synchronous>, transform_indices = @transform_6, window_bounds = array<i64: 16, 1>}, {transform_indices = @transform_7, window_bounds = array<i64: 8, 128>}, {transform_indices = @transform_8, window_bounds = array<i64: 8, 128>}]} {
    %c0 = arith.constant 0 : index
    %c0_0 = arith.constant 0 : index
    %0 = vector.load %arg1[%c0, %c0_0] : memref<128x16xf32, #tpu.memory_space<vmem>>, vector<128x16xf32>
    %1 = arith.truncf %0 : vector<128x16xf32> to vector<128x16xbf16>
    %c0_1 = arith.constant 0 : index
    %c0_2 = arith.constant 0 : index
    %2 = vector.load %arg2[%c0_1, %c0_2] : memref<32x16xbf16, #tpu.memory_space<vmem>>, vector<32x16xbf16>
    %cst = arith.constant dense<0.000000e+00> : vector<32x128xf32>
    %3 = tpu.matmul %2, %1, %cst {dimension_numbers = #tpu.dot_dimension_numbers<[1], [1], [0], [0], [0, 0, 1, 0], [], []>} : vector<32x16xbf16>, vector<128x16xbf16>, vector<32x128xf32> -> vector<32x128xf32>
    %c0_3 = arith.constant 0 : index
    %c0_4 = arith.constant 0 : index
    %4 = vector.load %arg3[%c0_3, %c0_4] : memref<32x1xf32, #tpu.memory_space<vmem>>, vector<32x1xf32>
    %5 = vector.broadcast %4 : vector<32x1xf32> to vector<32x128xf32>
    %6 = arith.addf %3, %5 : vector<32x128xf32>
    %7 = math.tanh %6 : vector<32x128xf32>
    %c0_5 = arith.constant 0 : index
    %c0_6 = arith.constant 0 : index
    %8 = vector.load %arg4[%c0_5, %c0_6] : memref<32x32xbf16, #tpu.memory_space<vmem>>, vector<32x32xbf16>
    %9 = arith.truncf %7 : vector<32x128xf32> to vector<32x128xbf16>
    %cst_7 = arith.constant dense<0.000000e+00> : vector<32x128xf32>
    %10 = tpu.matmul %8, %9, %cst_7 {dimension_numbers = #tpu.dot_dimension_numbers<[1], [0], [0], [1], [0, 0, 1, 1], [], []>} : vector<32x32xbf16>, vector<32x128xbf16>, vector<32x128xf32> -> vector<32x128xf32>
    %c0_8 = arith.constant 0 : index
    %c0_9 = arith.constant 0 : index
    %11 = vector.load %arg5[%c0_8, %c0_9] : memref<32x1xf32, #tpu.memory_space<vmem>>, vector<32x1xf32>
    %12 = vector.broadcast %11 : vector<32x1xf32> to vector<32x128xf32>
    %13 = arith.addf %10, %12 : vector<32x128xf32>
    %14 = math.tanh %13 : vector<32x128xf32>
    %c0_10 = arith.constant 0 : index
    %c0_11 = arith.constant 0 : index
    %15 = vector.load %arg6[%c0_10, %c0_11] : memref<16x32xbf16, #tpu.memory_space<vmem>>, vector<16x32xbf16>
    %16 = arith.truncf %14 : vector<32x128xf32> to vector<32x128xbf16>
    %cst_12 = arith.constant dense<0.000000e+00> : vector<16x128xf32>
    %17 = tpu.matmul %15, %16, %cst_12 {dimension_numbers = #tpu.dot_dimension_numbers<[1], [0], [0], [1], [0, 0, 1, 1], [], []>} : vector<16x32xbf16>, vector<32x128xbf16>, vector<16x128xf32> -> vector<16x128xf32>
    %c0_13 = arith.constant 0 : index
    %c0_14 = arith.constant 0 : index
    %18 = vector.load %arg7[%c0_13, %c0_14] : memref<16x1xf32, #tpu.memory_space<vmem>>, vector<16x1xf32>
    %19 = vector.broadcast %18 : vector<16x1xf32> to vector<16x128xf32>
    %20 = arith.addf %17, %19 : vector<16x128xf32>
    %21 = vector.extract_strided_slice %20 {offsets = [0, 0], sizes = [8, 128], strides = [1, 1]} : vector<16x128xf32> to vector<8x128xf32>
    %c0_15 = arith.constant 0 : index
    %c0_16 = arith.constant 0 : index
    %22 = vector.load %arg8[%c0_15, %c0_16] : memref<8x128xf32, #tpu.memory_space<vmem>>, vector<8x128xf32>
    tpu.vector_store %arg8[%c0_15, %c0_16], %21 {strides = array<i32>} : memref<8x128xf32, #tpu.memory_space<vmem>>, vector<8x128xf32>,
    %23 = vector.extract_strided_slice %20 {offsets = [8, 0], sizes = [8, 128], strides = [1, 1]} : vector<16x128xf32> to vector<8x128xf32>
    %24 = math.exp %23 : vector<8x128xf32>
    %c0_17 = arith.constant 0 : index
    %c0_18 = arith.constant 0 : index
    %25 = vector.load %arg9[%c0_17, %c0_18] : memref<8x128xf32, #tpu.memory_space<vmem>>, vector<8x128xf32>
    tpu.vector_store %arg9[%c0_17, %c0_18], %24 {strides = array<i32>} : memref<8x128xf32, #tpu.memory_space<vmem>>, vector<8x128xf32>,
    return
  }
  func.func @transform_0(%arg0: i32) -> (i32, i32) {
    %c0_i32 = arith.constant 0 : i32
    %c0_i32_0 = arith.constant 0 : i32
    return %arg0, %c0_i32 : i32, i32
  }
  func.func @transform_1(%arg0: i32) -> (i32, i32) {
    %c0_i32 = arith.constant 0 : i32
    %c0_i32_0 = arith.constant 0 : i32
    %c0_i32_1 = arith.constant 0 : i32
    return %c0_i32, %c0_i32_0 : i32, i32
  }
  func.func @transform_2(%arg0: i32) -> (i32, i32) {
    %c0_i32 = arith.constant 0 : i32
    %c0_i32_0 = arith.constant 0 : i32
    %c0_i32_1 = arith.constant 0 : i32
    return %c0_i32, %c0_i32_0 : i32, i32
  }
  func.func @transform_3(%arg0: i32) -> (i32, i32) {
    %c0_i32 = arith.constant 0 : i32
    %c0_i32_0 = arith.constant 0 : i32
    %c0_i32_1 = arith.constant 0 : i32
    return %c0_i32, %c0_i32_0 : i32, i32
  }
  func.func @transform_4(%arg0: i32) -> (i32, i32) {
    %c0_i32 = arith.constant 0 : i32
    %c0_i32_0 = arith.constant 0 : i32
    %c0_i32_1 = arith.constant 0 : i32
    return %c0_i32, %c0_i32_0 : i32, i32
  }
  func.func @transform_5(%arg0: i32) -> (i32, i32) {
    %c0_i32 = arith.constant 0 : i32
    %c0_i32_0 = arith.constant 0 : i32
    %c0_i32_1 = arith.constant 0 : i32
    return %c0_i32, %c0_i32_0 : i32, i32
  }
  func.func @transform_6(%arg0: i32) -> (i32, i32) {
    %c0_i32 = arith.constant 0 : i32
    %c0_i32_0 = arith.constant 0 : i32
    %c0_i32_1 = arith.constant 0 : i32
    return %c0_i32, %c0_i32_0 : i32, i32
  }
  func.func @transform_7(%arg0: i32) -> (i32, i32) {
    %c0_i32 = arith.constant 0 : i32
    %c0_i32_0 = arith.constant 0 : i32
    return %c0_i32, %arg0 : i32, i32
  }
  func.func @transform_8(%arg0: i32) -> (i32, i32) {
    %c0_i32 = arith.constant 0 : i32
    %c0_i32_0 = arith.constant 0 : i32
    return %c0_i32, %arg0 : i32, i32
  }
}

</mosaic_0001>

<llo_original>
// kernel: diag_normal_network.1
$region0: #{diag_normal_network.1}
  #allocation0 [shape = 'u32[]', space=smem, size = 0x4, offset = 0x4, fixed_abs, tag = 'smem constant byte address 0x4 - core index']
  #allocation1 [shape = 'u32[144,128]{1,0:T(1,128)}', space=vmem, size = 0x12000, scoped, tag = 'internal scratch']
  %s0 = inlined_call_operand.vmem [shape: f32[256,16], index: 0, kind: input, shape index: {}]
  %s1 = inlined_call_operand.vmem [shape: bf16[32,16], index: 1, kind: input, shape index: {}]
  %s2 = inlined_call_operand.vmem [shape: f32[32,1], index: 2, kind: input, shape index: {}]
  %s3 = inlined_call_operand.vmem [shape: bf16[32,32], index: 3, kind: input, shape index: {}]
  %s4 = inlined_call_operand.vmem [shape: f32[32,1], index: 4, kind: input, shape index: {}]
  %s5 = inlined_call_operand.vmem [shape: bf16[16,32], index: 5, kind: input, shape index: {}]
  %s6 = inlined_call_operand.vmem [shape: f32[16,1], index: 6, kind: input, shape index: {}]
  %s7 = inlined_call_operand.hbm [shape: f32[8,256], index: 7, kind: output, shape index: {0}]
  %s8 = inlined_call_operand.hbm [shape: f32[8,256], index: 8, kind: output, shape index: {1}]
  %9 = xla_tuple %s7, %s8
  %s10 = sld [smem:[#allocation0]]
  $region69: #{diag_normal_network.1} parent=0
    _
  %s12 = ssub.s32 1, %s10
  %s13 = scalar_select 0, %s12, %s10
  $region1: #{diag_normal_network.1} parent=0
    #allocation2 [shape = 'u8[8192]{0}', space=vmem, size = 0x2000, scoped, tag = 'output window, operand 0']
    #allocation3 [shape = 's32[2]{0}', space=sflag, size = 0x8, scoped, tag = 'scoped memory for diag_normal_network.1']
    #allocation4 [shape = 'u8[8192]{0}', space=vmem, size = 0x2000, scoped, tag = 'output window, operand 1']
    #allocation5 [shape = 's32[2]{0}', space=sflag, size = 0x8, scoped, tag = 'scoped memory for diag_normal_network.1']
    %14 = vsyncpa [#allocation3], 0
    %s15 = scalar_lea.sflag [#allocation3], 1
    %16 = vsyncpa %s15, 0
    %17 = vsyncpa [#allocation5], 0
    %s18 = scalar_lea.sflag [#allocation5], 1
    %19 = vsyncpa %s18, 0
    loop: start=0, step=1, limit=4
    $region2: #{diag_normal_network.1} parent=1 // loop_pre_header
      _
    $region3: #{diag_normal_network.1} parent=1 // loop_header
      %s21 = sphi 0, %s25
      %p22 = scmp.ge.s32.totalorder %s21, 4
      %s31 = sphi 0, %s33
      %s34 = sphi 0, %s31
      %s35 = sphi 0, %s34
      %s51 = sphi 0, %s35
      %s55 = sphi 0, %s55
      %s57 = sphi 0, %s55
      %s58 = sphi 0, %s57
      %s72 = sphi 0, %s58
      %s76 = sphi 0, %s76
      %s78 = sphi 0, %s76
      %s79 = sphi 0, %s78
      %s93 = sphi 0, %s79
      %s97 = sphi 0, %s97
      %s99 = sphi 0, %s97
      %s100 = sphi 0, %s99
      %s114 = sphi 0, %s100
      %s118 = sphi 0, %s118
      %s120 = sphi 0, %s118
      %s121 = sphi 0, %s120
      %s135 = sphi 0, %s121
      %s139 = sphi 0, %s139
      %s141 = sphi 0, %s139
      %s142 = sphi 0, %s141
      %s156 = sphi 0, %s142
      %s160 = sphi 0, %s160
      %s162 = sphi 0, %s160
      %s163 = sphi 0, %s162
      %s177 = sphi 0, %s163
      %s183 = sphi 0, %s185
      %s186 = sphi 0, %s183
      %s187 = sphi 0, %s186
      %s203 = sphi 0, %s187
      %s209 = sphi 0, %s211
      %s212 = sphi 0, %s209
      %s213 = sphi 0, %s212
      %s229 = sphi 0, %s213
    $region4: #{diag_normal_network.1} parent=1 // loop_header_branch
      %24 = sbr.rel (%p22) target = $region8
    $region5: #{diag_normal_network.1} parent=1 // loop_body
      %s26 = ssub.s32 %s21, 1
      %s27 = ssub.s32 %s21, 2
      %s28 = sadd.s32 %s21, 1
      %s29 = ssub.s32 %s21, %s28
      %p30 = scmp.eq.s32.totalorder %s29, 0
      %s32 = sadd.s32 %s31, 1
      %s33 = scalar_select %p30, %s31, %s32
      %p36 = pneg %p30
      %p37 = scmp.eq.s32.totalorder %s21, 1
      %p38 = por %p36, %p37
      %p39 = scmp.ne.s32.totalorder %s31, %s34
      %p40 = scmp.eq.s32.totalorder %s21, 0
      %p41 = por %p39, %p40
      %p42 = scmp.ne.s32.totalorder %s31, %s34
      %p43 = scmp.eq.s32.totalorder %s26, 1
      %p44 = por %p42, %p43
      %p45 = scmp.ne.s32.totalorder %s34, %s35
      %p46 = scmp.eq.s32.totalorder %s26, 0
      %p47 = por %p45, %p46
      %p48 = scmp.ne.s32.totalorder %s34, %s35
      %p49 = scmp.eq.s32.totalorder %s27, 1
      %p50 = por %p48, %p49
      %p52 = scmp.ne.s32.totalorder %s35, %s51
      %p53 = scmp.eq.s32.totalorder %s27, 0
      %p54 = por %p52, %p53
      %s56 = sadd.s32 %s55, 1
      %p59 = scmp.eq.s32.totalorder %s21, 1
      %p60 = scmp.ne.s32.totalorder %s55, %s57
      %p61 = scmp.eq.s32.totalorder %s21, 0
      %p62 = por %p60, %p61
      %p63 = scmp.ne.s32.totalorder %s55, %s57
      %p64 = scmp.eq.s32.totalorder %s26, 1
      %p65 = por %p63, %p64
      %p66 = scmp.ne.s32.totalorder %s57, %s58
      %p67 = scmp.eq.s32.totalorder %s26, 0
      %p68 = por %p66, %p67
      %p69 = scmp.ne.s32.totalorder %s57, %s58
      %p70 = scmp.eq.s32.totalorder %s27, 1
      %p71 = por %p69, %p70
      %p73 = scmp.ne.s32.totalorder %s58, %s72
      %p74 = scmp.eq.s32.totalorder %s27, 0
      %p75 = por %p73, %p74
      %s77 = sadd.s32 %s76, 1
      %p80 = scmp.eq.s32.totalorder %s21, 1
      %p81 = scmp.ne.s32.totalorder %s76, %s78
      %p82 = scmp.eq.s32.totalorder %s21, 0
      %p83 = por %p81, %p82
      %p84 = scmp.ne.s32.totalorder %s76, %s78
      %p85 = scmp.eq.s32.totalorder %s26, 1
      %p86 = por %p84, %p85
      %p87 = scmp.ne.s32.totalorder %s78, %s79
      %p88 = scmp.eq.s32.totalorder %s26, 0
      %p89 = por %p87, %p88
      %p90 = scmp.ne.s32.totalorder %s78, %s79
      %p91 = scmp.eq.s32.totalorder %s27, 1
      %p92 = por %p90, %p91
      %p94 = scmp.ne.s32.totalorder %s79, %s93
      %p95 = scmp.eq.s32.totalorder %s27, 0
      %p96 = por %p94, %p95
      %s98 = sadd.s32 %s97, 1
      %p101 = scmp.eq.s32.totalorder %s21, 1
      %p102 = scmp.ne.s32.totalorder %s97, %s99
      %p103 = scmp.eq.s32.totalorder %s21, 0
      %p104 = por %p102, %p103
      %p105 = scmp.ne.s32.totalorder %s97, %s99
      %p106 = scmp.eq.s32.totalorder %s26, 1
      %p107 = por %p105, %p106
      %p108 = scmp.ne.s32.totalorder %s99, %s100
      %p109 = scmp.eq.s32.totalorder %s26, 0
      %p110 = por %p108, %p109
      %p111 = scmp.ne.s32.totalorder %s99, %s100
      %p112 = scmp.eq.s32.totalorder %s27, 1
      %p113 = por %p111, %p112
      %p115 = scmp.ne.s32.totalorder %s100, %s114
      %p116 = scmp.eq.s32.totalorder %s27, 0
      %p117 = por %p115, %p116
      %s119 = sadd.s32 %s118, 1
      %p122 = scmp.eq.s32.totalorder %s21, 1
      %p123 = scmp.ne.s32.totalorder %s118, %s120
      %p124 = scmp.eq.s32.totalorder %s21, 0
      %p125 = por %p123, %p124
      %p126 = scmp.ne.s32.totalorder %s118, %s120
      %p127 = scmp.eq.s32.totalorder %s26, 1
      %p128 = por %p126, %p127
      %p129 = scmp.ne.s32.totalorder %s120, %s121
      %p130 = scmp.eq.s32.totalorder %s26, 0
      %p131 = por %p129, %p130
      %p132 = scmp.ne.s32.totalorder %s120, %s121
      %p133 = scmp.eq.s32.totalorder %s27, 1
      %p134 = por %p132, %p133
      %p136 = scmp.ne.s32.totalorder %s121, %s135
      %p137 = scmp.eq.s32.totalorder %s27, 0
      %p138 = por %p136, %p137
      %s140 = sadd.s32 %s139, 1
      %p143 = scmp.eq.s32.totalorder %s21, 1
      %p144 = scmp.ne.s32.totalorder %s139, %s141
      %p145 = scmp.eq.s32.totalorder %s21, 0
      %p146 = por %p144, %p145
      %p147 = scmp.ne.s32.totalorder %s139, %s141
      %p148 = scmp.eq.s32.totalorder %s26, 1
      %p149 = por %p147, %p148
      %p150 = scmp.ne.s32.totalorder %s141, %s142
      %p151 = scmp.eq.s32.totalorder %s26, 0
      %p152 = por %p150, %p151
      %p153 = scmp.ne.s32.totalorder %s141, %s142
      %p154 = scmp.eq.s32.totalorder %s27, 1
      %p155 = por %p153, %p154
      %p157 = scmp.ne.s32.totalorder %s142, %s156
      %p158 = scmp.eq.s32.totalorder %s27, 0
      %p159 = por %p157, %p158
      %s161 = sadd.s32 %s160, 1
      %p164 = scmp.eq.s32.totalorder %s21, 1
      %p165 = scmp.ne.s32.totalorder %s160, %s162
      %p166 = scmp.eq.s32.totalorder %s21, 0
      %p167 = por %p165, %p166
      %p168 = scmp.ne.s32.totalorder %s160, %s162
      %p169 = scmp.eq.s32.totalorder %s26, 1
      %p170 = por %p168, %p169
      %p171 = scmp.ne.s32.totalorder %s162, %s163
      %p172 = scmp.eq.s32.totalorder %s26, 0
      %p173 = por %p171, %p172
      %p174 = scmp.ne.s32.totalorder %s162, %s163
      %p175 = scmp.eq.s32.totalorder %s27, 1
      %p176 = por %p174, %p175
      %p178 = scmp.ne.s32.totalorder %s163, %s177
      %p179 = scmp.eq.s32.totalorder %s27, 0
      %p180 = por %p178, %p179
      %s181 = ssub.s32 %s21, %s28
      %p182 = scmp.eq.s32.totalorder %s181, 0
      %s184 = sadd.s32 %s183, 1
      %s185 = scalar_select %p182, %s183, %s184
      %p188 = pneg %p182
      %p189 = scmp.eq.s32.totalorder %s21, 1
      %p190 = por %p188, %p189
      %p191 = scmp.ne.s32.totalorder %s183, %s186
      %p192 = scmp.eq.s32.totalorder %s21, 0
      %p193 = por %p191, %p192
      %p194 = scmp.ne.s32.totalorder %s183, %s186
      %p195 = scmp.eq.s32.totalorder %s26, 1
      %p196 = por %p194, %p195
      %p197 = scmp.ne.s32.totalorder %s186, %s187
      %p198 = scmp.eq.s32.totalorder %s26, 0
      %p199 = por %p197, %p198
      %p200 = scmp.ne.s32.totalorder %s186, %s187
      %p201 = scmp.eq.s32.totalorder %s27, 1
      %p202 = por %p200, %p201
      %p204 = scmp.ne.s32.totalorder %s187, %s203
      %p205 = scmp.eq.s32.totalorder %s27, 0
      %p206 = por %p204, %p205
      %s207 = ssub.s32 %s21, %s28
      %p208 = scmp.eq.s32.totalorder %s207, 0
      %s210 = sadd.s32 %s209, 1
      %s211 = scalar_select %p208, %s209, %s210
      %p214 = pneg %p208
      %p215 = scmp.eq.s32.totalorder %s21, 1
      %p216 = por %p214, %p215
      %p217 = scmp.ne.s32.totalorder %s209, %s212
      %p218 = scmp.eq.s32.totalorder %s21, 0
      %p219 = por %p217, %p218
      %p220 = scmp.ne.s32.totalorder %s209, %s212
      %p221 = scmp.eq.s32.totalorder %s26, 1
      %p222 = por %p220, %p221
      %p223 = scmp.ne.s32.totalorder %s212, %s213
      %p224 = scmp.eq.s32.totalorder %s26, 0
      %p225 = por %p223, %p224
      %p226 = scmp.ne.s32.totalorder %s212, %s213
      %p227 = scmp.eq.s32.totalorder %s27, 1
      %p228 = por %p226, %p227
      %p230 = scmp.ne.s32.totalorder %s213, %s229
      %p231 = scmp.eq.s32.totalorder %s27, 0
      %p232 = por %p230, %p231
      %p233 = scmp.le.s32.totalorder 1, %s21
      %p234 = scmp.lt.s32.totalorder %s21, 3
      %p235 = pnand %p233, %p234
      %p236 = pneg %p235
      // Predicated region
      $region9: #{diag_normal_network.1} parent=5 // pred_check
        _
      $region10: #{diag_normal_network.1} parent=5 // pred_check_branch
        %238 = sbr.rel (%p235) target = $region12
      $region11: #{diag_normal_network.1} parent=5 // pred_region
        %s239 = ssub.s32 %s21, 1
        // Predicated region
        $region13: #{diag_normal_network.1} parent=11 // pred_check
          %p240 = pneg %p68
        $region14: #{diag_normal_network.1} parent=11 // pred_check_branch
          %242 = sbr.rel (%p240) target = $region16
        $region15: #{diag_normal_network.1} parent=11 // pred_region
          _
        $region16: #{diag_normal_network.1} parent=11 // pred_fallthru
          _
        // Predicated region
        $region17: #{diag_normal_network.1} parent=11 // pred_check
          %p243 = pneg %p89
        $region18: #{diag_normal_network.1} parent=11 // pred_check_branch
          %245 = sbr.rel (%p243) target = $region20
        $region19: #{diag_normal_network.1} parent=11 // pred_region
          _
        $region20: #{diag_normal_network.1} parent=11 // pred_fallthru
          _
        // Predicated region
        $region21: #{diag_normal_network.1} parent=11 // pred_check
          %p246 = pneg %p110
        $region22: #{diag_normal_network.1} parent=11 // pred_check_branch
          %248 = sbr.rel (%p246) target = $region24
        $region23: #{diag_normal_network.1} parent=11 // pred_region
          _
        $region24: #{diag_normal_network.1} parent=11 // pred_fallthru
          _
        // Predicated region
        $region25: #{diag_normal_network.1} parent=11 // pred_check
          %p249 = pneg %p131
        $region26: #{diag_normal_network.1} parent=11 // pred_check_branch
          %251 = sbr.rel (%p249) target = $region28
        $region27: #{diag_normal_network.1} parent=11 // pred_region
          _
        $region28: #{diag_normal_network.1} parent=11 // pred_fallthru
          _
        // Predicated region
        $region29: #{diag_normal_network.1} parent=11 // pred_check
          %p252 = pneg %p152
        $region30: #{diag_normal_network.1} parent=11 // pred_check_branch
          %254 = sbr.rel (%p252) target = $region32
        $region31: #{diag_normal_network.1} parent=11 // pred_region
          _
        $region32: #{diag_normal_network.1} parent=11 // pred_fallthru
          _
        // Predicated region
        $region33: #{diag_normal_network.1} parent=11 // pred_check
          %p255 = pneg %p173
        $region34: #{diag_normal_network.1} parent=11 // pred_check_branch
          %257 = sbr.rel (%p255) target = $region36
        $region35: #{diag_normal_network.1} parent=11 // pred_region
          _
        $region36: #{diag_normal_network.1} parent=11 // pred_fallthru
          _
      $region12: #{diag_normal_network.1} parent=5 // pred_fallthru
        _
      %p258 = scmp.lt.s32.totalorder %s21, 2
      // Predicated region
      $region37: #{diag_normal_network.1} parent=5 // pred_check
        %p259 = pneg %p258
      $region38: #{diag_normal_network.1} parent=5 // pred_check_branch
        %261 = sbr.rel (%p259) target = $region40
      $region39: #{diag_normal_network.1} parent=5 // pred_region
        // Predicated region
        $region41: #{diag_normal_network.1} parent=39 // pred_check
          %p262 = pneg %p41
        $region42: #{diag_normal_network.1} parent=39 // pred_check_branch
          %264 = sbr.rel (%p262) target = $region44
        $region43: #{diag_normal_network.1} parent=39 // pred_region
          %s265 = smul.u32 16, %s21
          %p266 = scmp.lt.s32.totalorder %s265, 31
          %s267 = scalar_select %p266, %s265, 31
          %s268 = smul.addr %s267, 8
          %s269 = scalar_lea.vmem %s0, %s268
          %s270 = smul.u32 16, %s21
        $region44: #{diag_normal_network.1} parent=39 // pred_fallthru
          _
      $region40: #{diag_normal_network.1} parent=5 // pred_fallthru
        _
      %p271 = scmp.le.s32.totalorder 1, %s21
      %p272 = scmp.lt.s32.totalorder %s21, 3
      %p273 = pnand %p271, %p272
      %p274 = pneg %p273
      // Predicated region
      $region45: #{diag_normal_network.1} parent=5 // pred_check
        _
      $region46: #{diag_normal_network.1} parent=5 // pred_check_branch
        %276 = sbr.rel (%p273) target = $region48
      $region47: #{diag_normal_network.1} parent=5 // pred_region
        %s277 = ssub.s32 %s21, 1
        %s278 = smul.u32 16, %s26
        %p279 = scmp.lt.s32.totalorder %s278, 31
        %s280 = scalar_select %p279, %s278, 31
        %s281 = smul.addr %s280, 8
        %s282 = scalar_lea.vmem %s0, %s281
        %p283 = pneg %p47
        %p284 = pneg %p44
        %p285 = pneg %p68
        %p286 = pneg %p65
        %p287 = pneg %p89
        %p288 = pneg %p86
        %p289 = pneg %p110
        %p290 = pneg %p107
        %p291 = pneg %p131
        %p292 = pneg %p128
        %p293 = pneg %p152
        %p294 = pneg %p149
        %p295 = pneg %p173
        %p296 = pneg %p170
        %p297 = pneg %p199
        %p298 = pneg %p196
        %s299 = sand.u32 %s186, 1
        %s300 = scalar_lea.sflag [#allocation3], %s299
        %s301 = sand.u32 %s186, 1
        %s302 = smul.addr %s301, 8
        %s303 = scalar_lea.vmem [#allocation2], %s302
        %p304 = pneg %p225
        %p305 = pneg %p222
        %s306 = sand.u32 %s212, 1
        %s307 = scalar_lea.sflag [#allocation5], %s306
        %s308 = sand.u32 %s212, 1
        %s309 = smul.addr %s308, 8
        %s310 = scalar_lea.vmem [#allocation4], %s309
        %s311 = smul.u32 16, %s26
        %p312 = scmp.lt.s32.totalorder %s311, 31
        %s313 = scalar_select %p312, %s311, 31
        %s314 = smul.addr %s313, 8
        %s315 = scalar_lea.vmem %s0, %s314
        %s316 = smul.u32 16, %s26
        %v318 = vld [vmem:[%s315] sm:$0xff]
        %v319 = vld [vmem:[%s315 + $0x8] sm:$0xff]
        %v320 = vld [vmem:[%s315 + $0x10] sm:$0xff]
        %v321 = vld [vmem:[%s315 + $0x18] sm:$0xff]
        %v322 = vld [vmem:[%s315 + $0x20] sm:$0xff]
        %v323 = vld [vmem:[%s315 + $0x28] sm:$0xff]
        %v324 = vld [vmem:[%s315 + $0x30] sm:$0xff]
        %v325 = vld [vmem:[%s315 + $0x38] sm:$0xff]
        %v326 = vld [vmem:[%s315 + $0x40] sm:$0xff]
        %v327 = vld [vmem:[%s315 + $0x48] sm:$0xff]
        %v328 = vld [vmem:[%s315 + $0x50] sm:$0xff]
        %v329 = vld [vmem:[%s315 + $0x58] sm:$0xff]
        %v330 = vld [vmem:[%s315 + $0x60] sm:$0xff]
        %v331 = vld [vmem:[%s315 + $0x68] sm:$0xff]
        %v332 = vld [vmem:[%s315 + $0x70] sm:$0xff]
        %v333 = vld [vmem:[%s315 + $0x78] sm:$0xff]
        %v334 = vpack.c.bf16 %v319, %v318
        %v335 = vpack.c.bf16 %v321, %v320
        %v336 = vpack.c.bf16 %v323, %v322
        %v337 = vpack.c.bf16 %v325, %v324
        %v338 = vpack.c.bf16 %v327, %v326
        %v339 = vpack.c.bf16 %v329, %v328
        %v340 = vpack.c.bf16 %v331, %v330
        %v341 = vpack.c.bf16 %v333, %v332
        %v342 = vld [vmem:[%s1] sm:$0xf]
        %v343 = vld [vmem:[%s1 + $0x4] sm:$0xf]
        %v344 = vld [vmem:[%s1 + $0x8] sm:$0xf]
        %v345 = vld [vmem:[%s1 + $0xc] sm:$0xf]
        %v346 = vld [vmem:[%s2] sm:$0xff]
        %v347 = vld [vmem:[%s2 + $0x8] sm:$0xff]
        %v348 = vld [vmem:[%s2 + $0x10] sm:$0xff]
        %v349 = vld [vmem:[%s2 + $0x18] sm:$0xff]
        %351 = vset.pattern.permute.xlu0 0
        %352 = vperm.xlu0 %351, %v346
        %v353 = vpop.permute.xlu0 %352
        %356 = vset.pattern.permute.xlu0 0
        %357 = vperm.xlu0 %356, %v347
        %v358 = vpop.permute.xlu0 %357
        %361 = vset.pattern.permute.xlu0 0
        %362 = vperm.xlu0 %361, %v348
        %v363 = vpop.permute.xlu0 %362
        %366 = vset.pattern.permute.xlu0 0
        %367 = vperm.xlu0 %366, %v349
        %v368 = vpop.permute.xlu0 %367
        %v374 = vunpack.c.l.b16 %v342
        %v375 = vunpack.c.l.b16 %v343
        %v376 = vunpack.c.l.b16 %v344
        %v377 = vunpack.c.l.b16 %v345
        %v378 = vpack.c.b16 %v375, %v374
        %v379 = vpack.c.b16 %v377, %v376
        %vm380 = vcmask 130048
        %v382 = vsel %vm380, %v378, 0
        %v385 = vsel %vm380, %v379, 0
        %v388 = vsel %vm380, %v334, 0
        %v391 = vsel %vm380, %v335, 0
        %v394 = vsel %vm380, %v336, 0
        %v397 = vsel %vm380, %v337, 0
        %v400 = vsel %vm380, %v338, 0
        %v403 = vsel %vm380, %v339, 0
        %v406 = vsel %vm380, %v340, 0
        %v409 = vsel %vm380, %v341, 0
        %411 = vmatprep.subr.bf16.mxu0 0
        %412 = vmatpush1.bf16.xpose.msra.mxu0 %v388
        %413 = vmatprep.subr.bf16.mxu0 0
        %414 = vmatpush1.bf16.xpose.msra.mxu0 %v391
        %415 = vmatprep.subr.bf16.mxu0 0
        %416 = vmatpush1.bf16.xpose.msra.mxu0 %v394
        %417 = vmatprep.subr.bf16.mxu0 0
        %418 = vmatpush1.bf16.xpose.msra.mxu0 %v397
        %419 = vmatprep.subr.bf16.mxu0 0
        %420 = vmatpush1.bf16.xpose.msra.mxu0 %v400
        %421 = vmatprep.subr.bf16.mxu0 0
        %422 = vmatpush1.bf16.xpose.msra.mxu0 %v403
        %423 = vmatprep.subr.bf16.mxu0 0
        %424 = vmatpush1.bf16.xpose.msra.mxu0 %v406
        %425 = vmatprep.subr.bf16.mxu0 0
        %426 = vmatpush1.bf16.xpose.msra.mxu0 %v409
        %427 = vmatprep.subr.bf16.mxu0 0
        %428 = vmatpush1.bf16.xpose.msra.mxu0 0
        %429 = vmatprep.subr.bf16.mxu0 0
        %430 = vmatpush1.bf16.xpose.msra.mxu0 0
        %431 = vmatprep.subr.bf16.mxu0 0
        %432 = vmatpush1.bf16.xpose.msra.mxu0 0
        %433 = vmatprep.subr.bf16.mxu0 0
        %434 = vmatpush1.bf16.xpose.msra.mxu0 0
        %435 = vmatprep.subr.bf16.mxu0 0
        %436 = vmatpush1.bf16.xpose.msra.mxu0 0
        %437 = vmatprep.subr.bf16.mxu0 0
        %438 = vmatpush1.bf16.xpose.msra.mxu0 0
        %439 = vmatprep.subr.bf16.mxu0 0
        %440 = vmatpush1.bf16.xpose.msra.mxu0 0
        %441 = vmatprep.subr.bf16.mxu0 0
        %442 = vmatpush1.bf16.xpose.msra.mxu0 0
        %443 = vmatprep.mubr.bf16.mxu0 0
        %444 = vmatmul.mubr.bf16.gmra.mrb[0].mxu0 %v382
        %v445 = vpop.f32.mrb[0].mxu0
        %v446 = vadd.f32 %v353, %v445
        %v447 = vpop.f32.mrb[0].mxu0
        %v448 = vpop.f32.mrb[0].mxu0
        %v449 = vadd.f32 %v358, %v448
        %v450 = vpop.f32.mrb[0].mxu0
        %451 = vmatprep.mubr.bf16.mxu0 0
        %452 = vmatmul.mubr.bf16.gmra.mrb[0].mxu0 %v385
        %v453 = vpop.f32.mrb[0].mxu0
        %v454 = vadd.f32 %v363, %v453
        %v455 = vpop.f32.mrb[0].mxu0
        %v456 = vpop.f32.mrb[0].mxu0
        %v457 = vadd.f32 %v368, %v456
        %v458 = vpop.f32.mrb[0].mxu0
        %459 = vdwg.mxu0
        %v460 = vtanh.pop %v446
        %v461 = vtanh.pop %v449
        %v462 = vtanh.pop %v454
        %v463 = vtanh.pop %v457
        %v464 = vld [vmem:[%s3] sm:$0xf]
        %v465 = vld [vmem:[%s3 + $0x4] sm:$0xf]
        %v466 = vld [vmem:[%s3 + $0x8] sm:$0xf]
        %v467 = vld [vmem:[%s3 + $0xc] sm:$0xf]
        %v468 = vpack.c.bf16 %v461, %v460
        %v469 = vpack.c.bf16 %v463, %v462
        %v470 = vld [vmem:[%s4] sm:$0xff]
        %v471 = vld [vmem:[%s4 + $0x8] sm:$0xff]
        %v472 = vld [vmem:[%s4 + $0x10] sm:$0xff]
        %v473 = vld [vmem:[%s4 + $0x18] sm:$0xff]
        %475 = vset.pattern.permute.xlu0 0
        %476 = vperm.xlu0 %475, %v470
        %v477 = vpop.permute.xlu0 %476
        %480 = vset.pattern.permute.xlu0 0
        %481 = vperm.xlu0 %480, %v471
        %v482 = vpop.permute.xlu0 %481
        %485 = vset.pattern.permute.xlu0 0
        %486 = vperm.xlu0 %485, %v472
        %v487 = vpop.permute.xlu0 %486
        %490 = vset.pattern.permute.xlu0 0
        %491 = vperm.xlu0 %490, %v473
        %v492 = vpop.permute.xlu0 %491
        %v498 = vunpack.c.l.b16 %v464
        %v499 = vunpack.c.l.b16 %v465
        %v500 = vunpack.c.l.b16 %v466
        %v501 = vunpack.c.l.b16 %v467
        %v502 = vpack.c.b16 %v499, %v498
        %v503 = vpack.c.b16 %v501, %v500
        %vm504 = vcmask 261120
        %v506 = vsel %vm504, %v502, 0
        %v509 = vsel %vm504, %v503, 0
        %511 = vmatprep.subr.bf16.mxu0 0
        %512 = vmatpush1.bf16.msra.mxu0 %v468
        %513 = vmatprep.subr.bf16.mxu0 0
        %514 = vmatpush1.bf16.msra.mxu0 %v469
        %515 = vmatprep.subr.bf16.mxu0 0
        %516 = vmatpush1.bf16.msra.mxu0 0
        %517 = vmatprep.subr.bf16.mxu0 0
        %518 = vmatpush1.bf16.msra.mxu0 0
        %519 = vmatprep.subr.bf16.mxu0 0
        %520 = vmatpush1.bf16.msra.mxu0 0
        %521 = vmatprep.subr.bf16.mxu0 0
        %522 = vmatpush1.bf16.msra.mxu0 0
        %523 = vmatprep.subr.bf16.mxu0 0
        %524 = vmatpush1.bf16.msra.mxu0 0
        %525 = vmatprep.subr.bf16.mxu0 0
        %526 = vmatpush1.bf16.msra.mxu0 0
        %527 = vmatprep.subr.bf16.mxu0 0
        %528 = vmatpush1.bf16.msra.mxu0 0
        %529 = vmatprep.subr.bf16.mxu0 0
        %530 = vmatpush1.bf16.msra.mxu0 0
        %531 = vmatprep.subr.bf16.mxu0 0
        %532 = vmatpush1.bf16.msra.mxu0 0
        %533 = vmatprep.subr.bf16.mxu0 0
        %534 = vmatpush1.bf16.msra.mxu0 0
        %535 = vmatprep.subr.bf16.mxu0 0
        %536 = vmatpush1.bf16.msra.mxu0 0
        %537 = vmatprep.subr.bf16.mxu0 0
        %538 = vmatpush1.bf16.msra.mxu0 0
        %539 = vmatprep.subr.bf16.mxu0 0
        %540 = vmatpush1.bf16.msra.mxu0 0
        %541 = vmatprep.subr.bf16.mxu0 0
        %542 = vmatpush1.bf16.msra.mxu0 0
        %543 = vmatprep.mubr.bf16.mxu0 0
        %544 = vmatmul.mubr.bf16.gmra.mrb[0].mxu0 %v506
        %v545 = vpop.f32.mrb[0].mxu0
        %v546 = vadd.f32 %v477, %v545
        %v547 = vpop.f32.mrb[0].mxu0
        %v548 = vpop.f32.mrb[0].mxu0
        %v549 = vadd.f32 %v482, %v548
        %v550 = vpop.f32.mrb[0].mxu0
        %551 = vmatprep.mubr.bf16.mxu0 0
        %552 = vmatmul.mubr.bf16.gmra.mrb[0].mxu0 %v509
        %v553 = vpop.f32.mrb[0].mxu0
        %v554 = vadd.f32 %v487, %v553
        %v555 = vpop.f32.mrb[0].mxu0
        %v556 = vpop.f32.mrb[0].mxu0
        %v557 = vadd.f32 %v492, %v556
        %v558 = vpop.f32.mrb[0].mxu0
        %559 = vdwg.mxu0
        %v560 = vtanh.pop %v546
        %v561 = vtanh.pop %v549
        %v562 = vtanh.pop %v554
        %v563 = vtanh.pop %v557
        %v564 = vld [vmem:[%s5] sm:$0xf]
        %v565 = vld [vmem:[%s5 + $0x4] sm:$0xf]
        %v566 = vpack.c.bf16 %v561, %v560
        %v567 = vpack.c.bf16 %v563, %v562
        %v568 = vld [vmem:[%s6] sm:$0xff]
        %v569 = vld [vmem:[%s6 + $0x8] sm:$0xff]
        %571 = vset.pattern.permute.xlu0 0
        %572 = vperm.xlu0 %571, %v568
        %v573 = vpop.permute.xlu0 %572
        %576 = vset.pattern.permute.xlu0 0
        %577 = vperm.xlu0 %576, %v569
        %v578 = vpop.permute.xlu0 %577
        %v582 = vunpack.c.l.b16 %v564
        %v583 = vunpack.c.l.b16 %v565
        %v584 = vpack.c.b16 %v583, %v582
        %v586 = vsel %vm504, %v584, 0
        %588 = vmatprep.subr.bf16.mxu0 0
        %589 = vmatpush1.bf16.msra.mxu0 %v566
        %590 = vmatprep.subr.bf16.mxu0 0
        %591 = vmatpush1.bf16.msra.mxu0 %v567
        %592 = vmatprep.subr.bf16.mxu0 0
        %593 = vmatpush1.bf16.msra.mxu0 0
        %594 = vmatprep.subr.bf16.mxu0 0
        %595 = vmatpush1.bf16.msra.mxu0 0
        %596 = vmatprep.subr.bf16.mxu0 0
        %597 = vmatpush1.bf16.msra.mxu0 0
        %598 = vmatprep.subr.bf16.mxu0 0
        %599 = vmatpush1.bf16.msra.mxu0 0
        %600 = vmatprep.subr.bf16.mxu0 0
        %601 = vmatpush1.bf16.msra.mxu0 0
        %602 = vmatprep.subr.bf16.mxu0 0
        %603 = vmatpush1.bf16.msra.mxu0 0
        %604 = vmatprep.subr.bf16.mxu0 0
        %605 = vmatpush1.bf16.msra.mxu0 0
        %606 = vmatprep.subr.bf16.mxu0 0
        %607 = vmatpush1.bf16.msra.mxu0 0
        %608 = vmatprep.subr.bf16.mxu0 0
        %609 = vmatpush1.bf16.msra.mxu0 0
        %610 = vmatprep.subr.bf16.mxu0 0
        %611 = vmatpush1.bf16.msra.mxu0 0
        %612 = vmatprep.subr.bf16.mxu0 0
        %613 = vmatpush1.bf16.msra.mxu0 0
        %614 = vmatprep.subr.bf16.mxu0 0
        %615 = vmatpush1.bf16.msra.mxu0 0
        %616 = vmatprep.subr.bf16.mxu0 0
        %617 = vmatpush1.bf16.msra.mxu0 0
        %618 = vmatprep.subr.bf16.mxu0 0
        %619 = vmatpush1.bf16.msra.mxu0 0
        %620 = vmatprep.mubr.bf16.mxu0 0
        %621 = vmatmul.mubr.bf16.gmra.mrb[0].mxu0 %v586
        %v622 = vpop.f32.mrb[0].mxu0
        %v623 = vadd.f32 %v573, %v622
        %v624 = vpop.f32.mrb[0].mxu0
        %v625 = vpop.f32.mrb[0].mxu0
        %v626 = vadd.f32 %v578, %v625
        %v627 = vpop.f32.mrb[0].mxu0
        %628 = vdwg.mxu0
        %629 = vst [vmem:[%s303] sm:$0xff] %v623
        %v630 = vmul.f32 %v626, 1.442695
        %v631 = vpow.pop %v630
        %632 = vst [vmem:[%s310] sm:$0xff] %v631
        %s633 = sand.u32 %s186, 1
        %s634 = scalar_lea.sflag [#allocation3], %s633
        %s635 = sand.u32 %s186, 1
        %s636 = smul.addr %s635, 8
        %s637 = scalar_lea.vmem [#allocation2], %s636
        %s638 = sand.u32 %s212, 1
        %s639 = scalar_lea.sflag [#allocation5], %s638
        %s640 = sand.u32 %s212, 1
        %s641 = smul.addr %s640, 8
        %s642 = scalar_lea.vmem [#allocation4], %s641
        // Predicated region
        $region49: #{diag_normal_network.1} parent=47 // pred_check
          %p643 = pneg %p196
        $region50: #{diag_normal_network.1} parent=47 // pred_check_branch
          %645 = sbr.rel (%p643) target = $region52
        $region51: #{diag_normal_network.1} parent=47 // pred_region
          %s647 = ssub.s32 128, 128
          %648 = vsyncadd %s634, %s647
          %s649 = smul.addr %s26, 128
          %s650 = scalar_lea.hbm %s7, %s649
          %s652 = sshll.u32 %s637, 4
          %s653 = int_to_ptr.vmem [resolvable:$true] %s652
          %655 = dma.vmem_to_hbm [thread:$0]  %s653, 128, %s650, %s634
        $region52: #{diag_normal_network.1} parent=47 // pred_fallthru
          _
        // Predicated region
        $region53: #{diag_normal_network.1} parent=47 // pred_check
          %p656 = pneg %p222
        $region54: #{diag_normal_network.1} parent=47 // pred_check_branch
          %658 = sbr.rel (%p656) target = $region56
        $region55: #{diag_normal_network.1} parent=47 // pred_region
          %s660 = ssub.s32 128, 128
          %661 = vsyncadd %s639, %s660
          %s662 = smul.addr %s26, 128
          %s663 = scalar_lea.hbm %s8, %s662
          %s665 = sshll.u32 %s642, 4
          %s666 = int_to_ptr.vmem [resolvable:$true] %s665
          %668 = dma.vmem_to_hbm [thread:$0]  %s666, 128, %s663, %s639
        $region56: #{diag_normal_network.1} parent=47 // pred_fallthru
          _
      $region48: #{diag_normal_network.1} parent=5 // pred_fallthru
        _
      %p669 = scmp.le.s32.totalorder 2, %s21
      // Predicated region
      $region57: #{diag_normal_network.1} parent=5 // pred_check
        %p670 = pneg %p669
      $region58: #{diag_normal_network.1} parent=5 // pred_check_branch
        %672 = sbr.rel (%p670) target = $region60
      $region59: #{diag_normal_network.1} parent=5 // pred_region
        %s673 = ssub.s32 %s21, 2
        // Predicated region
        $region61: #{diag_normal_network.1} parent=59 // pred_check
          %p674 = pneg %p202
        $region62: #{diag_normal_network.1} parent=59 // pred_check_branch
          %676 = sbr.rel (%p674) target = $region64
        $region63: #{diag_normal_network.1} parent=59 // pred_region
          %s677 = sand.u32 %s187, 1
          %s678 = scalar_lea.sflag [#allocation3], %s677
          %s679 = sand.u32 %s187, 1
          %s680 = smul.addr %s679, 8
          %s681 = scalar_lea.vmem [#allocation2], %s680
          %682 = dma.done %s678, 128
        $region64: #{diag_normal_network.1} parent=59 // pred_fallthru
          _
        // Predicated region
        $region65: #{diag_normal_network.1} parent=59 // pred_check
          %p683 = pneg %p228
        $region66: #{diag_normal_network.1} parent=59 // pred_check_branch
          %685 = sbr.rel (%p683) target = $region68
        $region67: #{diag_normal_network.1} parent=59 // pred_region
          %s686 = sand.u32 %s213, 1
          %s687 = scalar_lea.sflag [#allocation5], %s686
          %s688 = sand.u32 %s213, 1
          %s689 = smul.addr %s688, 8
          %s690 = scalar_lea.vmem [#allocation4], %s689
          %691 = dma.done %s687, 128
        $region68: #{diag_normal_network.1} parent=59 // pred_fallthru
          _
      $region60: #{diag_normal_network.1} parent=5 // pred_fallthru
        _
    $region6: #{diag_normal_network.1} parent=1 // loop_footer
      %s25 = sadd.s32 1, %s21
    $region7: #{diag_normal_network.1} parent=1 // loop_footer_branch
      %20 = sbr.rel target = $region3
    $region8: #{diag_normal_network.1} parent=1 // loop_exit
      _
    %692 = vsyncpa [#allocation3], 1
    %s693 = scalar_lea.sflag [#allocation3], 1
    %694 = vsyncpa %s693, 1
    %695 = vsyncpa [#allocation5], 1
    %s696 = scalar_lea.sflag [#allocation5], 1
    %697 = vsyncpa %s696, 1

</llo_original>
